<compile_context>
chip_gen: v5e
topology: v5e:2x2
jax: 0.10.0
libtpu: 0.0.40
codegen_flags: <defaults>
</compile_context>

<pallas_src>
import functools

import jax
import jax.numpy as jnp
from jax import lax
from jax.experimental import pallas as pl
from jax.experimental.pallas import tpu as pltpu


def _round_up(x: int, m: int) -> int:
    return ((x + m - 1) // m) * m


def _label_smoothing_kernel(pred_ref, tgt_ref, out_ref, acc_ref, *,
                            smoothing: float, n_total: int, n_padded: int,
                            c_total: int, tile_rows: int, tiles_per_part: int):
    p = pl.program_id(0)          # parallel partition (TensorCore split on v7x)
    i = pl.program_id(1)          # row-tile index within the partition (reduction axis)

    @pl.when(i == 0)
    def _init():
        acc_ref[...] = jnp.zeros_like(acc_ref)

    pred = pred_ref[...].astype(jnp.float32)          # (TN, Cp)
    tn, c_pad = pred.shape
    class_ids = lax.broadcasted_iota(jnp.int32, (tn, c_pad), 1)

    # Mask padded class lanes (static check: no-op when C is already lane aligned).
    if c_pad != c_total:
        pred = jnp.where(class_ids < c_total, pred, jnp.float32(-1e30))

    # Numerically stable log-softmax pieces (row reductions only).
    row_max = jnp.max(pred, axis=-1, keepdims=True)                      # (TN, 1)
    shifted = pred - row_max                                             # (TN, Cp)
    log_z = jnp.log(jnp.sum(jnp.exp(shifted), axis=-1, keepdims=True))   # (TN, 1)

    if c_pad != c_total:
        shifted_valid = jnp.where(class_ids < c_total, shifted, 0.0)
    else:
        shifted_valid = shifted
    # sum_c log_prob = sum_c shifted - C * logZ   (over real classes only)
    sum_log_prob = jnp.sum(shifted_valid, axis=-1, keepdims=True) - c_total * log_z

    # log_prob at the target column: gather via masked row-sum.
    tgt = tgt_ref[...]                                                   # (TN, 1) int32
    tgt_shifted = jnp.sum(jnp.where(class_ids == tgt, shifted, 0.0),
                          axis=-1, keepdims=True)                        # (TN, 1)
    tgt_log_prob = tgt_shifted - log_z

    off_w = smoothing / (c_total - 1.0)
    on_w = 1.0 - smoothing
    per_row = -off_w * sum_log_prob - (on_w - off_w) * tgt_log_prob      # (TN, 1)

    # Mask rows that are padding (beyond the real N).
    if n_padded != n_total:
        row_start = (p * tiles_per_part + i) * tile_rows
        row_ids = row_start + lax.broadcasted_iota(jnp.int32, (tn, 1), 0)
        per_row = jnp.where(row_ids < n_total, per_row, 0.0)

    acc_ref[...] += jnp.sum(per_row, keepdims=True)                      # (1, 1)

    @pl.when(i == tiles_per_part - 1)
    def _finalize():
        out_ref[...] = acc_ref[...].reshape(1, 1, 1)


def label_smoothing_loss(pred: jax.Array, target: jax.Array, smoothing: float = 0.1,
                         *, num_parallel: int = 2) -> jax.Array:
    """Matches LabelSmoothingLoss.forward(pred, target).

    pred:   (N, C) float logits (f32 or bf16)
    target: (N,)   integer class labels
    returns scalar float32 loss
    """
    n, c = pred.shape
    c_pad = _round_up(c, 128)                       # keep class axis lane-aligned
    itemsize = jnp.dtype(pred.dtype).itemsize

    # Row tile: multiple of 8, ~8 MiB per pred buffer so 2x buffering fits even
    # v7x's 64 MiB VMEM for large vocabularies; don't over-pad tiny inputs.
    bytes_per_row = c_pad * itemsize
    tn_budget = max(8, ((8 << 20) // bytes_per_row) // 8 * 8)
    tn = max(8, min(512, tn_budget, _round_up(pl.cdiv(n, num_parallel), 8)))

    n_pad = _round_up(n, tn * num_parallel)
    tiles_per_part = n_pad // (tn * num_parallel)

    pred_p = pred
    if (n_pad != n) or (c_pad != c):
        pred_p = jnp.pad(pred, ((0, n_pad - n), (0, c_pad - c)))
    tgt_p = target.astype(jnp.int32).reshape(n, 1)
    if n_pad != n:
        tgt_p = jnp.pad(tgt_p, ((0, n_pad - n), (0, 0)))

    kernel = functools.partial(
        _label_smoothing_kernel,
        smoothing=float(smoothing), n_total=n, n_padded=n_pad, c_total=c,
        tile_rows=tn, tiles_per_part=tiles_per_part)

    pred_block_bytes = tn * c_pad * itemsize
    vmem_limit = min(64 << 20, max(32 << 20, 4 * pred_block_bytes + (8 << 20)))

    partial_sums = pl.pallas_call(
        kernel,
        out_shape=jax.ShapeDtypeStruct((num_parallel, 1, 1), jnp.float32),
        grid=(num_parallel, tiles_per_part),
        in_specs=[
            pl.BlockSpec((tn, c_pad), lambda p, i: (p * tiles_per_part + i, 0)),
            pl.BlockSpec((tn, 1), lambda p, i: (p * tiles_per_part + i, 0)),
        ],
        out_specs=pl.BlockSpec((1, 1, 1), lambda p, i: (p, 0, 0)),
        scratch_shapes=[pltpu.VMEM((1, 1), jnp.float32)],
        compiler_params=pltpu.CompilerParams(
            dimension_semantics=("parallel", "arbitrary"),
            vmem_limit_bytes=vmem_limit),
    )(pred_p, tgt_p)

    # Final combine (divide by the GLOBAL N, not per-block row count).
    return jnp.sum(partial_sums) / n


def _reference(pred, target, smoothing=0.1):
    # pure-JAX reference mirroring the PyTorch forward
    log_prob = jax.nn.log_softmax(pred.astype(jnp.float32), axis=-1)
    c = pred.shape[-1]
    weight = jnp.full(pred.shape, smoothing / (c - 1.0), dtype=jnp.float32)
    onehot = jax.nn.one_hot(target, c, dtype=jnp.float32)
    weight = weight * (1.0 - onehot) + onehot * (1.0 - smoothing)
    return jnp.mean(jnp.sum(-weight * log_prob, axis=-1))


if __name__ == "__main__":
    key = jax.random.PRNGKey(0)

    # Case 1: lane/sublane aligned shape.
    k1, k2, k3, k4 = jax.random.split(key, 4)
    N, C = 8, 128
    pred = jax.random.normal(k1, (N, C), dtype=jnp.float32)
    target = jax.random.randint(k2, (N,), 0, C, dtype=jnp.int32)
    loss = jax.block_until_ready(label_smoothing_loss(pred, target, smoothing=0.1))
    ref = _reference(pred, target, smoothing=0.1)
    assert jnp.allclose(loss, ref, atol=1e-5, rtol=1e-5), (loss, ref)

    # Case 2: unaligned rows / classes (exercises row + class padding & masking).
    N2, C2 = 10, 37
    pred2 = jax.random.normal(k3, (N2, C2), dtype=jnp.float32)
    target2 = jax.random.randint(k4, (N2,), 0, C2, dtype=jnp.int32)
    loss2 = jax.block_until_ready(label_smoothing_loss(pred2, target2, smoothing=0.1))
    ref2 = _reference(pred2, target2, smoothing=0.1)
    assert jnp.allclose(loss2, ref2, atol=1e-5, rtol=1e-5), (loss2, ref2)

    print("KERNEL_OK")
</pallas_src>

<mosaic_0001>
module attributes {stable_mosaic.version = 11 : i64} {
  func.func @_label_smoothing_kernel(%arg0: i32, %arg1: i32, %arg2: memref<8x128xf32, #tpu.memory_space<vmem>>, %arg3: memref<8x1xi32, #tpu.memory_space<vmem>>, %arg4: memref<1x1x1xf32, #tpu.memory_space<vmem>>, %arg5: memref<1x1xf32, #tpu.memory_space<vmem>>) attributes {dimension_semantics = [#tpu.dimension_semantics<parallel>, #tpu.dimension_semantics<arbitrary>], iteration_bounds = array<i64: 2, 1>, scalar_prefetch = 0 : i64, scratch_operands = 1 : i64, tpu.core_type = #tpu.core_type<tc>, window_params = [{transform_indices = @transform_0, window_bounds = array<i64: 8, 128>}, {transform_indices = @transform_1, window_bounds = array<i64: 8, 1>}, {transform_indices = @transform_2, window_bounds = array<i64: 1, 1, 1>}]} {
    %c0_i32 = arith.constant 0 : i32
    %0 = arith.cmpi eq, %arg1, %c0_i32 : i32
    %1 = arith.extui %0 : i1 to i32
    %c0_i32_0 = arith.constant 0 : i32
    %2 = arith.cmpi ne, %1, %c0_i32_0 : i32
    scf.if %2 {
      %cst_20 = arith.constant 0.000000e+00 : f32
      %52 = vector.broadcast %cst_20 : f32 to vector<1x1xf32>
      %c0_21 = arith.constant 0 : index
      %c0_22 = arith.constant 0 : index
      %53 = vector.load %arg5[%c0_21, %c0_22] : memref<1x1xf32, #tpu.memory_space<vmem>>, vector<1x1xf32>
      tpu.vector_store %arg5[%c0_21, %c0_22], %52 {strides = array<i32>} : memref<1x1xf32, #tpu.memory_space<vmem>>, vector<1x1xf32>,
    } else {
    }
    %c0 = arith.constant 0 : index
    %c0_1 = arith.constant 0 : index
    %3 = vector.load %arg2[%c0, %c0_1] : memref<8x128xf32, #tpu.memory_space<vmem>>, vector<8x128xf32>
    %4 = tpu.iota {dimensions = array<i32: 1>} : vector<8x128xi32>
    %cst = arith.constant dense<0xFF800000> : vector<8xf32>
    %5 = vector.multi_reduction <maximumf>, %3, %cst [1] : vector<8x128xf32> to vector<8xf32>
    %6 = vector.shape_cast %5 : vector<8xf32> to vector<8x1xf32>
    %7 = vector.broadcast %6 : vector<8x1xf32> to vector<8x128xf32>
    %8 = arith.subf %3, %7 : vector<8x128xf32>
    %9 = math.exp %8 : vector<8x128xf32>
    %cst_2 = arith.constant dense<0.000000e+00> : vector<8xf32>
    %10 = vector.multi_reduction <add>, %9, %cst_2 [1] : vector<8x128xf32> to vector<8xf32>
    %11 = vector.shape_cast %10 : vector<8xf32> to vector<8x1xf32>
    %12 = math.log %11 : vector<8x1xf32>
    %cst_3 = arith.constant dense<0.000000e+00> : vector<8xf32>
    %13 = vector.multi_reduction <add>, %8, %cst_3 [1] : vector<8x128xf32> to vector<8xf32>
    %14 = vector.shape_cast %13 : vector<8xf32> to vector<8x1xf32>
    %cst_4 = arith.constant 1.280000e+02 : f32
    %15 = vector.broadcast %cst_4 : f32 to vector<8x1xf32>
    %16 = arith.mulf %15, %12 : vector<8x1xf32>
    %17 = arith.subf %14, %16 : vector<8x1xf32>
    %c0_5 = arith.constant 0 : index
    %c0_6 = arith.constant 0 : index
    %18 = vector.load %arg3[%c0_5, %c0_6] : memref<8x1xi32, #tpu.memory_space<vmem>>, vector<8x1xi32>
    %19 = vector.broadcast %18 : vector<8x1xi32> to vector<8x128xi32>
    %20 = arith.cmpi eq, %4, %19 : vector<8x128xi32>
    %cst_7 = arith.constant 0.000000e+00 : f32
    %21 = vector.broadcast %cst_7 : f32 to vector<8x128xf32>
    %22 = arith.select %20, %8, %21 : vector<8x128xi1>, vector<8x128xf32>
    %cst_8 = arith.constant dense<0.000000e+00> : vector<8xf32>
    %23 = vector.multi_reduction <add>, %22, %cst_8 [1] : vector<8x128xf32> to vector<8xf32>
    %24 = vector.shape_cast %23 : vector<8xf32> to vector<8x1xf32>
    %25 = arith.subf %24, %12 : vector<8x1xf32>
    %cst_9 = arith.constant -7.87401571E-4 : f32
    %26 = vector.broadcast %cst_9 : f32 to vector<8x1xf32>
    %27 = arith.mulf %26, %17 : vector<8x1xf32>
    %cst_10 = arith.constant 0.899212599 : f32
    %28 = vector.broadcast %cst_10 : f32 to vector<8x1xf32>
    %29 = arith.mulf %28, %25 : vector<8x1xf32>
    %30 = arith.subf %27, %29 : vector<8x1xf32>
    %c1_i32 = arith.constant 1 : i32
    %31 = arith.muli %arg0, %c1_i32 : i32
    %32 = arith.addi %31, %arg1 : i32
    %c8_i32 = arith.constant 8 : i32
    %33 = arith.muli %32, %c8_i32 : i32
    %34 = tpu.iota {dimensions = array<i32: 0>} : vector<8x1xi32>
    %35 = vector.broadcast %33 : i32 to vector<8x1xi32>
    %36 = arith.addi %35, %34 : vector<8x1xi32>
    %c8_i32_11 = arith.constant 8 : i32
    %37 = vector.broadcast %c8_i32_11 : i32 to vector<8x1xi32>
    %38 = arith.cmpi slt, %36, %37 : vector<8x1xi32>
    %cst_12 = arith.constant 0.000000e+00 : f32
    %39 = vector.broadcast %cst_12 : f32 to vector<8x1xf32>
    %40 = arith.select %38, %30, %39 : vector<8x1xi1>, vector<8x1xf32>
    %c0_13 = arith.constant 0 : index
    %c0_14 = arith.constant 0 : index
    %41 = vector.load %arg5[%c0_13, %c0_14] : memref<1x1xf32, #tpu.memory_space<vmem>>, vector<1x1xf32>
    %42 = vector.shape_cast %40 : vector<8x1xf32> to vector<1x8x1xf32>
    %cst_15 = arith.constant dense<0.000000e+00> : vector<1xf32>
    %43 = vector.multi_reduction <add>, %42, %cst_15 [1, 2] : vector<1x8x1xf32> to vector<1xf32>
    %44 = vector.shape_cast %43 : vector<1xf32> to vector<1x1x1xf32>
    %45 = vector.extract %44[0, 0, 0] : f32 from vector<1x1x1xf32>
    %46 = vector.broadcast %45 : f32 to vector<1x1xf32>
    %47 = arith.addf %41, %46 : vector<1x1xf32>
    %c0_16 = arith.constant 0 : index
    %c0_17 = arith.constant 0 : index
    %48 = vector.load %arg5[%c0_16, %c0_17] : memref<1x1xf32, #tpu.memory_space<vmem>>, vector<1x1xf32>
    tpu.vector_store %arg5[%c0_16, %c0_17], %47 {strides = array<i32>} : memref<1x1xf32, #tpu.memory_space<vmem>>, vector<1x1xf32>,
    %c0_i32_18 = arith.constant 0 : i32
    %49 = arith.cmpi eq, %arg1, %c0_i32_18 : i32
    %50 = arith.extui %49 : i1 to i32
    %c0_i32_19 = arith.constant 0 : i32
    %51 = arith.cmpi ne, %50, %c0_i32_19 : i32
    scf.if %51 {
      %c0_20 = arith.constant 0 : index
      %c0_21 = arith.constant 0 : index
      %52 = vector.load %arg5[%c0_20, %c0_21] : memref<1x1xf32, #tpu.memory_space<vmem>>, vector<1x1xf32>
      %53 = vector.shape_cast %52 : vector<1x1xf32> to vector<1x1x1xf32>
      %c0_22 = arith.constant 0 : index
      %c0_23 = arith.constant 0 : index
      %c0_24 = arith.constant 0 : index
      %54 = vector.load %arg4[%c0_22, %c0_23, %c0_24] : memref<1x1x1xf32, #tpu.memory_space<vmem>>, vector<1x1x1xf32>
      tpu.vector_store %arg4[%c0_22, %c0_23, %c0_24], %53 {strides = array<i32>} : memref<1x1x1xf32, #tpu.memory_space<vmem>>, vector<1x1x1xf32>,
    } else {
    }
    return
  }
  func.func @transform_0(%arg0: i32, %arg1: i32) -> (i32, i32) {
    %c1_i32 = arith.constant 1 : i32
    %0 = arith.muli %arg0, %c1_i32 : i32
    %1 = arith.addi %0, %arg1 : i32
    %c0_i32 = arith.constant 0 : i32
    %c0_i32_0 = arith.constant 0 : i32
    return %1, %c0_i32 : i32, i32
  }
  func.func @transform_1(%arg0: i32, %arg1: i32) -> (i32, i32) {
    %c1_i32 = arith.constant 1 : i32
    %0 = arith.muli %arg0, %c1_i32 : i32
    %1 = arith.addi %0, %arg1 : i32
    %c0_i32 = arith.constant 0 : i32
    %c0_i32_0 = arith.constant 0 : i32
    return %1, %c0_i32 : i32, i32
  }
  func.func @transform_2(%arg0: i32, %arg1: i32) -> (i32, i32, i32) {
    %c0_i32 = arith.constant 0 : i32
    %c0_i32_0 = arith.constant 0 : i32
    %c0_i32_1 = arith.constant 0 : i32
    return %arg0, %c0_i32, %c0_i32_0 : i32, i32, i32
  }
}

</mosaic_0001>

<llo_original>
// kernel: tpu_custom_call.1
$region0: #{tpu_custom_call.1}
  #allocation0 [shape = 'u32[]', space=smem, size = 0x4, offset = 0x4, fixed_abs, tag = 'smem constant byte address 0x4 - core index']
  #allocation1 [shape = 'u32[72,128]{1,0:T(1,128)}', space=vmem, size = 0x9000, scoped, tag = 'internal scratch']
  #allocation2 [shape = 'f32[1,1]{1,0:T(1,128)}', space=vmem, size = 0x200, scoped, tag = 'scratch operand']
  %s0 = inlined_call_operand.vmem [shape: f32[16,128], index: 0, kind: input, shape index: {}]
  %s1 = inlined_call_operand.vmem [shape: s32[16,1], index: 1, kind: input, shape index: {}]
  %s2 = inlined_call_operand.vmem [shape: f32[2,1,1], index: 2, kind: output, shape index: {}]
  %s3 = sld [smem:[#allocation0]]
  $region49: #{tpu_custom_call.1} parent=0
    _
  %s5 = ssub.s32 1, %s3
  %s6 = scalar_select 0, %s5, %s3
  loop: start=0, step=1, limit=4
  $region2: #{tpu_custom_call.1} parent=0 // loop_pre_header
    _
  $region3: #{tpu_custom_call.1} parent=0 // loop_header
    %s8 = sphi 0, %s12
    %p9 = scmp.ge.s32.totalorder %s8, 4
    %s15 = sphi 0, %s27
    %s16 = sphi 0, %s23
    %s17 = sphi 0, %s15
    %s18 = sphi 0, %s16
    %s19 = sphi 0, %s17
    %s20 = sphi 0, %s18
    %s32 = sphi 0, %s34
    %s35 = sphi 0, %s32
    %s36 = sphi 0, %s35
    %s52 = sphi 0, %s36
    %s60 = sphi 0, %s62
    %s63 = sphi 0, %s60
    %s64 = sphi 0, %s63
    %s80 = sphi 0, %s64
    %s86 = sphi 0, %s88
    %s89 = sphi 0, %s86
    %s90 = sphi 0, %s89
    %s106 = sphi 0, %s90
  $region4: #{tpu_custom_call.1} parent=0 // loop_header_branch
    %11 = sbr.rel (%p9) target = $region8
  $region5: #{tpu_custom_call.1} parent=0 // loop_body
    %s13 = ssub.s32 %s8, 1
    %s14 = ssub.s32 %s8, 2
    %s21 = sadd.s32 1, %s16
    %p22 = scmp.ge.s32.totalorder %s21, 1
    %s23 = scalar_select %p22, 0, %s21
    %s24 = sadd.s32 1, %s15
    %s25 = scalar_select %p22, %s24, %s15
    %p26 = scmp.ge.s32.totalorder %s25, 2
    %s27 = scalar_select %p26, 0, %s25
    %s28 = sadd.s32 %s15, %s16
    %s29 = sadd.s32 %s27, %s23
    %s30 = ssub.s32 %s28, %s29
    %p31 = scmp.eq.s32.totalorder %s30, 0
    %s33 = sadd.s32 %s32, 1
    %s34 = scalar_select %p31, %s32, %s33
    %p37 = pneg %p31
    %p38 = scmp.eq.s32.totalorder %s8, 1
    %p39 = por %p37, %p38
    %p40 = scmp.ne.s32.totalorder %s32, %s35
    %p41 = scmp.eq.s32.totalorder %s8, 0
    %p42 = por %p40, %p41
    %p43 = scmp.ne.s32.totalorder %s32, %s35
    %p44 = scmp.eq.s32.totalorder %s13, 1
    %p45 = por %p43, %p44
    %p46 = scmp.ne.s32.totalorder %s35, %s36
    %p47 = scmp.eq.s32.totalorder %s13, 0
    %p48 = por %p46, %p47
    %p49 = scmp.ne.s32.totalorder %s35, %s36
    %p50 = scmp.eq.s32.totalorder %s14, 1
    %p51 = por %p49, %p50
    %p53 = scmp.ne.s32.totalorder %s36, %s52
    %p54 = scmp.eq.s32.totalorder %s14, 0
    %p55 = por %p53, %p54
    %s56 = sadd.s32 %s15, %s16
    %s57 = sadd.s32 %s27, %s23
    %s58 = ssub.s32 %s56, %s57
    %p59 = scmp.eq.s32.totalorder %s58, 0
    %s61 = sadd.s32 %s60, 1
    %s62 = scalar_select %p59, %s60, %s61
    %p65 = pneg %p59
    %p66 = scmp.eq.s32.totalorder %s8, 1
    %p67 = por %p65, %p66
    %p68 = scmp.ne.s32.totalorder %s60, %s63
    %p69 = scmp.eq.s32.totalorder %s8, 0
    %p70 = por %p68, %p69
    %p71 = scmp.ne.s32.totalorder %s60, %s63
    %p72 = scmp.eq.s32.totalorder %s13, 1
    %p73 = por %p71, %p72
    %p74 = scmp.ne.s32.totalorder %s63, %s64
    %p75 = scmp.eq.s32.totalorder %s13, 0
    %p76 = por %p74, %p75
    %p77 = scmp.ne.s32.totalorder %s63, %s64
    %p78 = scmp.eq.s32.totalorder %s14, 1
    %p79 = por %p77, %p78
    %p81 = scmp.ne.s32.totalorder %s64, %s80
    %p82 = scmp.eq.s32.totalorder %s14, 0
    %p83 = por %p81, %p82
    %s84 = ssub.s32 %s15, %s27
    %p85 = scmp.eq.s32.totalorder %s84, 0
    %s87 = sadd.s32 %s86, 1
    %s88 = scalar_select %p85, %s86, %s87
    %p91 = pneg %p85
    %p92 = scmp.eq.s32.totalorder %s8, 1
    %p93 = por %p91, %p92
    %p94 = scmp.ne.s32.totalorder %s86, %s89
    %p95 = scmp.eq.s32.totalorder %s8, 0
    %p96 = por %p94, %p95
    %p97 = scmp.ne.s32.totalorder %s86, %s89
    %p98 = scmp.eq.s32.totalorder %s13, 1
    %p99 = por %p97, %p98
    %p100 = scmp.ne.s32.totalorder %s89, %s90
    %p101 = scmp.eq.s32.totalorder %s13, 0
    %p102 = por %p100, %p101
    %p103 = scmp.ne.s32.totalorder %s89, %s90
    %p104 = scmp.eq.s32.totalorder %s14, 1
    %p105 = por %p103, %p104
    %p107 = scmp.ne.s32.totalorder %s90, %s106
    %p108 = scmp.eq.s32.totalorder %s14, 0
    %p109 = por %p107, %p108
    %p110 = scmp.le.s32.totalorder 1, %s8
    %p111 = scmp.lt.s32.totalorder %s8, 3
    %p112 = pnand %p110, %p111
    %p113 = pneg %p112
    // Predicated region
    $region9: #{tpu_custom_call.1} parent=5 // pred_check
      _
    $region10: #{tpu_custom_call.1} parent=5 // pred_check_branch
      %115 = sbr.rel (%p112) target = $region12
    $region11: #{tpu_custom_call.1} parent=5 // pred_region
      %s116 = ssub.s32 %s8, 1
    $region12: #{tpu_custom_call.1} parent=5 // pred_fallthru
      _
    %p117 = scmp.lt.s32.totalorder %s8, 2
    // Predicated region
    $region13: #{tpu_custom_call.1} parent=5 // pred_check
      %p118 = pneg %p117
    $region14: #{tpu_custom_call.1} parent=5 // pred_check_branch
      %120 = sbr.rel (%p118) target = $region16
    $region15: #{tpu_custom_call.1} parent=5 // pred_region
      // Predicated region
      $region17: #{tpu_custom_call.1} parent=15 // pred_check
        %p121 = pneg %p42
      $region18: #{tpu_custom_call.1} parent=15 // pred_check_branch
        %123 = sbr.rel (%p121) target = $region20
      $region19: #{tpu_custom_call.1} parent=15 // pred_region
        %s124 = sadd.s32 %s15, %s16
        %p125 = scmp.lt.s32.totalorder %s124, 1
        %s126 = scalar_select %p125, %s124, 1
        %s127 = smul.addr %s126, 8
        %s128 = scalar_lea.vmem %s0, %s127
        %s129 = sadd.s32 %s15, %s16
      $region20: #{tpu_custom_call.1} parent=15 // pred_fallthru
        _
      // Predicated region
      $region21: #{tpu_custom_call.1} parent=15 // pred_check
        %p130 = pneg %p70
      $region22: #{tpu_custom_call.1} parent=15 // pred_check_branch
        %132 = sbr.rel (%p130) target = $region24
      $region23: #{tpu_custom_call.1} parent=15 // pred_region
        %s133 = sadd.s32 %s15, %s16
        %p134 = scmp.lt.s32.totalorder %s133, 1
        %s135 = scalar_select %p134, %s133, 1
        %s136 = smul.addr %s135, 8
        %s137 = scalar_lea.vmem %s1, %s136
        %s138 = sadd.s32 %s15, %s16
      $region24: #{tpu_custom_call.1} parent=15 // pred_fallthru
        _
    $region16: #{tpu_custom_call.1} parent=5 // pred_fallthru
      _
    %p139 = scmp.le.s32.totalorder 1, %s8
    %p140 = scmp.lt.s32.totalorder %s8, 3
    %p141 = pnand %p139, %p140
    %p142 = pneg %p141
    // Predicated region
    $region25: #{tpu_custom_call.1} parent=5 // pred_check
      _
    $region26: #{tpu_custom_call.1} parent=5 // pred_check_branch
      %144 = sbr.rel (%p141) target = $region28
    $region27: #{tpu_custom_call.1} parent=5 // pred_region
      %s145 = ssub.s32 %s8, 1
      %s146 = sadd.s32 %s17, %s18
      %p147 = scmp.lt.s32.totalorder %s146, 1
      %s148 = scalar_select %p147, %s146, 1
      %s149 = smul.addr %s148, 8
      %s150 = scalar_lea.vmem %s0, %s149
      %p151 = pneg %p48
      %p152 = pneg %p45
      %s153 = sadd.s32 %s17, %s18
      %p154 = scmp.lt.s32.totalorder %s153, 1
      %s155 = scalar_select %p154, %s153, 1
      %s156 = smul.addr %s155, 8
      %s157 = scalar_lea.vmem %s1, %s156
      %p158 = pneg %p76
      %p159 = pneg %p73
      %p160 = pneg %p102
      %p161 = pneg %p99
      %p162 = scmp.lt.s32.totalorder %s17, 1
      %s163 = scalar_select %p162, %s17, 1
      %s164 = scalar_lea.vmem %s2, %s163
      %s165 = sadd.s32 %s17, %s18
      %p166 = scmp.lt.s32.totalorder %s165, 1
      %s167 = scalar_select %p166, %s165, 1
      %s168 = smul.addr %s167, 8
      %s169 = scalar_lea.vmem %s0, %s168
      %s170 = sadd.s32 %s17, %s18
      %s171 = sadd.s32 %s17, %s18
      %p172 = scmp.lt.s32.totalorder %s171, 1
      %s173 = scalar_select %p172, %s171, 1
      %s174 = smul.addr %s173, 8
      %s175 = scalar_lea.vmem %s1, %s174
      %s176 = sadd.s32 %s17, %s18
      %p177 = scmp.lt.s32.totalorder %s17, 1
      %s178 = scalar_select %p177, %s17, 1
      %s179 = scalar_lea.vmem %s2, %s178
      %p180 = scmp.eq.s32.totalorder %s18, 0
      // Predicated region
      $region29: #{tpu_custom_call.1} parent=27 // pred_check
        %p181 = pneg %p180
      $region30: #{tpu_custom_call.1} parent=27 // pred_check_branch
        %183 = sbr.rel (%p181) target = $region32
      $region31: #{tpu_custom_call.1} parent=27 // pred_region
        %vm184 = vcmask 0
        %185 = vst.msk [vmem:[#allocation2] sm:$0x1] %vm184, 0.0
      $region32: #{tpu_custom_call.1} parent=27 // pred_fallthru
        _
      %v186 = vld [vmem:[%s169] sm:$0xff]
      %v187 = vlaneseq
      %v188 = vand.u32 %v187, 127
      %189 = vmax.xlane.f32.xlu0 %v186
      %v190 = vpop.xlane.xlu0 %189
      %v191 = vsub.f32 %v186, %v190
      %v192 = vmul.f32 %v191, 1.442695
      %v193 = vpow.pop %v192
      %194 = vadd.xlane.f32.xlu0 %v193
      %v195 = vpop.xlane.xlu0 %194
      %v196 = vlog2.pop %v195
      %v197 = vmul.f32 %v196, 0.6931472
      %198 = vadd.xlane.f32.xlu0 %v191
      %v199 = vpop.xlane.xlu0 %198
      %v200 = vmul.f32 %v197, 128.0
      %v201 = vsub.f32 %v199, %v200
      %v202 = vld [vmem:[%s175] sm:$0xff]
      %203 = vset.pattern.permute.xlu0 0
      %204 = vperm.xlu0 %203, %v202
      %v205 = vpop.permute.xlu0 %204
      %vm206 = vcmp.eq.s32.totalorder %v188, %v205
      %v207 = vsel %vm206, %v191, 0.0
      %208 = vadd.xlane.f32.xlu0 %v207
      %v209 = vpop.xlane.xlu0 %208
      %v210 = vsub.f32 %v209, %v197
      %v211 = vmul.f32 %v201, -0.0007874016
      %v212 = vmul.f32 %v210, 0.8992126
      %v213 = vsub.f32 %v211, %v212
      %s214 = sadd.s32 %s17, %s18
      %s215 = smul.u32 %s214, 8
      %v216 = vlaneseq
      %v217 = vshrl.u32 %v216, 7
      %v218 = vstv %s215
      %v219 = vadd.s32 %v218, %v217
      %vm220 = vcmp.lt.s32.totalorder %v219, 8
      %v221 = vsel %vm220, %v213, 0.0
      %v222 = vld [vmem:[#allocation2] sm:$0x1]
      %vm223 = vcmask 7168
      %v224 = vsel %vm223, %v221, 0.0
      %225 = vadd.xlane.f32.xlu0 %v224
      %v226 = vpop.xlane.xlu0 %225
      %v227 = vrot.slane %v226, 4
      %v228 = vadd.f32 %v226, %v227
      %v229 = vrot.slane %v228, 2
      %v230 = vadd.f32 %v228, %v229
      %v231 = vrot.slane %v230, 1
      %v232 = vadd.f32 %v230, %v231
      %s233 = vtos %v232
      %v234 = vstv %s233
      %v235 = vadd.f32 %v222, %v234
      %vm236 = vcmask 0
      %237 = vst.msk [vmem:[#allocation2] sm:$0x1] %vm236, %v235
      // Predicated region
      $region33: #{tpu_custom_call.1} parent=27 // pred_check
        %p238 = pneg %p180
      $region34: #{tpu_custom_call.1} parent=27 // pred_check_branch
        %240 = sbr.rel (%p238) target = $region36
      $region35: #{tpu_custom_call.1} parent=27 // pred_region
        %v241 = vld [vmem:[#allocation2] sm:$0x1]
        %242 = vst.msk [vmem:[%s179] sm:$0x1] %vm236, %v241
      $region36: #{tpu_custom_call.1} parent=27 // pred_fallthru
        _
      %p243 = scmp.lt.s32.totalorder %s17, 1
      %s244 = scalar_select %p243, %s17, 1
      %s245 = scalar_lea.vmem %s2, %s244
      // Predicated region
      $region37: #{tpu_custom_call.1} parent=27 // pred_check
        %p246 = pneg %p99
      $region38: #{tpu_custom_call.1} parent=27 // pred_check_branch
        %248 = sbr.rel (%p246) target = $region40
      $region39: #{tpu_custom_call.1} parent=27 // pred_region
        _
      $region40: #{tpu_custom_call.1} parent=27 // pred_fallthru
        _
    $region28: #{tpu_custom_call.1} parent=5 // pred_fallthru
      _
    %p249 = scmp.le.s32.totalorder 2, %s8
    // Predicated region
    $region41: #{tpu_custom_call.1} parent=5 // pred_check
      %p250 = pneg %p249
    $region42: #{tpu_custom_call.1} parent=5 // pred_check_branch
      %252 = sbr.rel (%p250) target = $region44
    $region43: #{tpu_custom_call.1} parent=5 // pred_region
      %s253 = ssub.s32 %s8, 2
      // Predicated region
      $region45: #{tpu_custom_call.1} parent=43 // pred_check
        %p254 = pneg %p105
      $region46: #{tpu_custom_call.1} parent=43 // pred_check_branch
        %256 = sbr.rel (%p254) target = $region48
      $region47: #{tpu_custom_call.1} parent=43 // pred_region
        %p257 = scmp.lt.s32.totalorder %s19, 1
        %s258 = scalar_select %p257, %s19, 1
        %s259 = scalar_lea.vmem %s2, %s258
      $region48: #{tpu_custom_call.1} parent=43 // pred_fallthru
        _
    $region44: #{tpu_custom_call.1} parent=5 // pred_fallthru
      _
  $region6: #{tpu_custom_call.1} parent=0 // loop_footer
    %s12 = sadd.s32 1, %s8
  $region7: #{tpu_custom_call.1} parent=0 // loop_footer_branch
    %7 = sbr.rel target = $region3
  $region8: #{tpu_custom_call.1} parent=0 // loop_exit
    _

</llo_original>
